<compile_context>
chip_gen: v5e
topology: v5e:2x2
jax: 0.10.0
libtpu: 0.0.40
codegen_flags: <defaults>
</compile_context>

<pallas_src>
import functools

import jax
import jax.numpy as jnp
from jax.experimental import pallas as pl
from jax.experimental.pallas import tpu as pltpu

LN_EPS = 1e-5        # nn.LayerNorm default eps
LOG_CLAMP = -100.0   # torch.nn.BCELoss clamps log terms at -100


def _round_up(n, m):
    return ((n + m - 1) // m) * m


def _physical_vmem_bytes():
    """Per-core VMEM capacity; falls back to the v7x floor (64 MiB)."""
    try:
        info = pltpu.get_tpu_info()
        v = getattr(info, "vmem_capacity_bytes", None)
        if v:
            return int(v)
    except Exception:
        pass
    return 64 * 1024 * 1024


def probing_kernel(x_ref, y_ref, g_ref, beta_ref, w1_ref, b1_ref, w2_ref, b2_ref,
                   out_ref, acc_ref, *, batch, steps_per_shard, needs_row_mask):
    """One batch tile: LayerNorm -> Linear -> ReLU -> Linear -> BCE-with-logits
    partial sum (accumulated per core-shard in VMEM)."""
    s = pl.program_id(1)

    @pl.when(s == 0)
    def _():
        acc_ref[...] = jnp.zeros_like(acc_ref)

    x = x_ref[...].astype(jnp.float32)
    tb = x.shape[0]
    od = y_ref.shape[-1]

    # ---- LayerNorm over the true (unpadded) audio_dim ----
    mean = jnp.mean(x, axis=-1, keepdims=True)
    diff = x - mean
    var = jnp.mean(diff * diff, axis=-1, keepdims=True)
    xn = (diff * jax.lax.rsqrt(var + LN_EPS) * g_ref[...].astype(jnp.float32)
          + beta_ref[...].astype(jnp.float32))

    # ---- Dropout: identity (eval mode). ----
    # TODO(synk): training-mode dropout would need pltpu.prng_seed/prng_random_bits masking.

    # ---- MLP head on the MXU (weights resident in VMEM across the grid) ----
    h = jnp.dot(xn.astype(w1_ref.dtype), w1_ref[...],
                preferred_element_type=jnp.float32) + b1_ref[...].astype(jnp.float32)
    h = jnp.maximum(h, 0.0)
    out = jnp.dot(h.astype(w2_ref.dtype), w2_ref[...],
                  preferred_element_type=jnp.float32) + b2_ref[...].astype(jnp.float32)

    # ---- BCE(sigmoid(out), y) from logits: one softplus per element ----
    y = y_ref[...].astype(jnp.float32)
    sp = jnp.maximum(out, 0.0) + jnp.log1p(jnp.exp(-jnp.abs(out)))  # softplus(out)
    log_p = jnp.maximum(out - sp, LOG_CLAMP)    # log(sigmoid(out))
    log_1mp = jnp.maximum(-sp, LOG_CLAMP)       # log(1 - sigmoid(out))
    bce = -(y * log_p + (1.0 - y) * log_1mp)

    if needs_row_mask:
        # Only emitted when the batch does not tile exactly (static check).
        c = pl.program_id(0)
        row0 = (c * steps_per_shard + s) * tb
        rows = jax.lax.broadcasted_iota(jnp.int32, (tb, 1), 0) + row0
        bce = jnp.where(rows < batch, bce, 0.0)

    # Per-core partial sum kept per output column in VMEM (no lane reduce here).
    acc_ref[...] += jnp.sum(bce, axis=0, keepdims=True)

    @pl.when(s == pl.num_programs(1) - 1)
    def _():
        row = jax.lax.broadcasted_iota(jnp.int32, (8, od), 0)
        out_ref[...] = jnp.where(row == 0, acc_ref[...], 0.0)


def probing_layer_loss(x, y, gamma, beta, w1, b1, w2, b2, *,
                       block_b=2048, mxu_dtype=jnp.float32, num_core_shards=2):
    """Fused ProbingLayer forward loss (eval mode).

    x: [B, audio_dim]; y: [B, output_dim]; gamma/beta: [1, audio_dim];
    w1: [audio_dim, mlp_dim]; b1: [1, mlp_dim]; w2: [mlp_dim, output_dim]; b2: [1, output_dim].
    mxu_dtype=jnp.bfloat16 gives ~2x MXU throughput (v5e/v6e/v7x) with f32
    accumulation; elementwise/EUP math stays f32 regardless of this flag.
    """
    B, audio_dim = x.shape
    output_dim = y.shape[1]
    mlp_dim = w1.shape[1]

    w1c = w1.astype(mxu_dtype)
    w2c = w2.astype(mxu_dtype)

    # ---- VMEM sizing: double-buffer-aware, chip-aware ----
    phys_vmem = _physical_vmem_bytes()
    vmem_limit = int(phys_vmem * 0.85)   # explicit: v5e default scoped limit is only 16 MiB
    budget = int(phys_vmem * 0.70)       # <= ~45 MiB on v7x's 64 MiB VMEM

    def tile_bytes(rows, cols, itemsize):
        sub = max(8, 32 // itemsize)     # sublane packing for narrow dtypes
        return _round_up(rows, sub) * _round_up(cols, 128) * itemsize

    # Pallas double-buffers every input, including constant-index residents -> x2.
    resident = 2 * (tile_bytes(audio_dim, mlp_dim, w1c.dtype.itemsize)
                    + tile_bytes(mlp_dim, output_dim, w2c.dtype.itemsize)
                    + tile_bytes(1, audio_dim, gamma.dtype.itemsize)
                    + tile_bytes(1, audio_dim, beta.dtype.itemsize)
                    + tile_bytes(1, mlp_dim, b1.dtype.itemsize)
                    + tile_bytes(1, output_dim, b2.dtype.itemsize))

    per_row = (2 * (_round_up(audio_dim, 128) * x.dtype.itemsize      # x double-buffered
                    + _round_up(output_dim, 128) * y.dtype.itemsize)  # y double-buffered
               + 4 * (2 * _round_up(audio_dim, 128)                   # f32 x, xn
                      + _round_up(mlp_dim, 128)                       # h
                      + 3 * _round_up(output_dim, 128)))              # out/bce/y temps

    headroom = budget - resident - (1 << 20)
    tb_cap = (headroom // per_row) // 8 * 8 if headroom > 0 else 0
    if tb_cap < 8:
        # TODO(synk): K-tile w1/w2 across the grid for weights that overflow VMEM.
        raise ValueError(
            f"ProbingLayer weights do not fit the VMEM budget "
            f"(resident={resident} B, budget={budget} B); needs K-tiling.")

    TB = max(8, min(block_b, tb_cap) // 8 * 8)
    if B >= 8:
        TB = min(TB, (B // 8) * 8)       # keep the block within the array extent

    num_steps = -(-B // TB)
    shards = int(min(max(1, num_core_shards), num_steps))   # v7x: 2 TCs; harmless on 1-TC chips
    steps_per_shard = -(-num_steps // shards)
    num_blocks = shards * steps_per_shard
    needs_row_mask = (num_blocks * TB != B)
    needs_clamp = (num_blocks != num_steps)

    def stream_map(c, s):
        idx = c * steps_per_shard + s
        if needs_clamp:
            idx = jnp.minimum(idx, num_steps - 1)   # extra tail blocks re-read last block; rows masked
        return (idx, 0)

    def resident_map(c, s):
        return (0, 0)    # same block every step -> stays in VMEM

    grid_spec = pltpu.PrefetchScalarGridSpec(
        num_scalar_prefetch=0,
        grid=(shards, steps_per_shard),
        in_specs=[
            pl.BlockSpec((TB, audio_dim), stream_map),        # x: streamed, native dtype, unpadded
            pl.BlockSpec((TB, output_dim), stream_map),       # y: streamed, native dtype, unpadded
            pl.BlockSpec((1, audio_dim), resident_map),       # gamma
            pl.BlockSpec((1, audio_dim), resident_map),       # beta
            pl.BlockSpec((audio_dim, mlp_dim), resident_map), # w1
            pl.BlockSpec((1, mlp_dim), resident_map),         # b1
            pl.BlockSpec((mlp_dim, output_dim), resident_map),# w2
            pl.BlockSpec((1, output_dim), resident_map),      # b2
        ],
        out_specs=pl.BlockSpec((8, output_dim), lambda c, s: (c, 0)),  # per-core partial sums
        scratch_shapes=[pltpu.VMEM((1, output_dim), jnp.float32)],
    )

    rows = num_blocks * TB
    bytes_accessed = (x.size * x.dtype.itemsize + y.size * y.dtype.itemsize
                      + w1c.nbytes + w2c.nbytes + gamma.nbytes + beta.nbytes
                      + b1.nbytes + b2.nbytes + shards * 8 * output_dim * 4)
    cost = pl.CostEstimate(
        flops=2 * rows * (audio_dim * mlp_dim + mlp_dim * output_dim) + 10 * rows * audio_dim,
        transcendentals=2 * rows * output_dim + rows,   # exp + log1p per output elem, rsqrt per row
        bytes_accessed=int(bytes_accessed),
    )

    kernel = functools.partial(probing_kernel, batch=B,
                               steps_per_shard=steps_per_shard,
                               needs_row_mask=needs_row_mask)

    partial = pl.pallas_call(
        kernel,
        out_shape=jax.ShapeDtypeStruct((shards * 8, output_dim), jnp.float32),
        grid_spec=grid_spec,
        compiler_params=pltpu.CompilerParams(
            # Core axis parallel (uses both v7x TCs), batch-step axis carries the accumulator.
            dimension_semantics=("parallel", "arbitrary"),
            vmem_limit_bytes=vmem_limit,
        ),
        cost_estimate=cost,
    )(x, y, gamma, beta, w1c, b1, w2c, b2)

    # Tiny cross-core reduction + mean normalization in JAX.
    return jnp.sum(partial) / (B * output_dim)


def reference_loss(x, y, gamma, beta, w1, b1, w2, b2):
    """Pure-JAX replica of the PyTorch ProbingLayer forward (eval mode)."""
    x = x.astype(jnp.float32)
    mean = jnp.mean(x, axis=-1, keepdims=True)
    var = jnp.mean(jnp.square(x - mean), axis=-1, keepdims=True)
    xn = (x - mean) * jax.lax.rsqrt(var + LN_EPS) * gamma + beta
    h = jnp.maximum(xn @ w1 + b1, 0.0)
    logit = jax.nn.sigmoid(h @ w2 + b2)
    bce = -(y * jnp.maximum(jnp.log(logit), LOG_CLAMP)
            + (1.0 - y) * jnp.maximum(jnp.log1p(-logit), LOG_CLAMP))
    return jnp.mean(bce)


if __name__ == "__main__":
    AUDIO_DIM, MLP_DIM, OUTPUT_DIM = 32, 64, 16

    key = jax.random.PRNGKey(0)
    kx, ky, kw1, kb1, kw2, kb2 = jax.random.split(key, 6)

    def make_inputs(batch):
        x = jax.random.normal(kx, (batch, AUDIO_DIM), jnp.float32)
        y = (jax.random.uniform(ky, (batch, OUTPUT_DIM)) > 0.5).astype(jnp.float32)
        return x, y

    gamma = jnp.ones((1, AUDIO_DIM), jnp.float32)   # nn.LayerNorm default init
    beta = jnp.zeros((1, AUDIO_DIM), jnp.float32)
    w1 = jax.random.normal(kw1, (AUDIO_DIM, MLP_DIM), jnp.float32) * 0.05
    b1 = jax.random.normal(kb1, (1, MLP_DIM), jnp.float32) * 0.05
    w2 = jax.random.normal(kw2, (MLP_DIM, OUTPUT_DIM), jnp.float32) * 0.05
    b2 = jax.random.normal(kb2, (1, OUTPUT_DIM), jnp.float32) * 0.05

    # Case 1: single grid step, batch divides tile exactly (no masks emitted).
    x, y = make_inputs(8)
    loss = jax.block_until_ready(probing_layer_loss(x, y, gamma, beta, w1, b1, w2, b2))
    ref = reference_loss(x, y, gamma, beta, w1, b1, w2, b2)
    assert jnp.allclose(loss, ref, rtol=1e-5, atol=1e-5), (loss, ref)

    # Case 2: forced tiny tile -> 2 core-shards x 2 steps with clamped + masked tail.
    x, y = make_inputs(20)
    loss = jax.block_until_ready(
        probing_layer_loss(x, y, gamma, beta, w1, b1, w2, b2, block_b=8))
    ref = reference_loss(x, y, gamma, beta, w1, b1, w2, b2)
    assert jnp.allclose(loss, ref, rtol=1e-5, atol=1e-5), (loss, ref)

    # Case 3: default tile sizing -> partial last tile masked, no clamping.
    loss = jax.block_until_ready(probing_layer_loss(x, y, gamma, beta, w1, b1, w2, b2))
    assert jnp.allclose(loss, ref, rtol=1e-5, atol=1e-5), (loss, ref)

    # Case 4: bf16 MXU operands (f32 accumulation) -- documented precision tradeoff.
    loss_bf16 = jax.block_until_ready(
        probing_layer_loss(x, y, gamma, beta, w1, b1, w2, b2, mxu_dtype=jnp.bfloat16))
    assert jnp.allclose(loss_bf16, ref, rtol=0.0, atol=1e-2), (loss_bf16, ref)

    print("KERNEL_OK")
</pallas_src>

<mosaic_0001>
module attributes {stable_mosaic.version = 11 : i64} {
  func.func @probing_kernel(%arg0: i32, %arg1: i32, %arg2: memref<8x32xf32, #tpu.memory_space<vmem>>, %arg3: memref<8x16xf32, #tpu.memory_space<vmem>>, %arg4: memref<1x32xf32, #tpu.memory_space<vmem>>, %arg5: memref<1x32xf32, #tpu.memory_space<vmem>>, %arg6: memref<32x64xf32, #tpu.memory_space<vmem>>, %arg7: memref<1x64xf32, #tpu.memory_space<vmem>>, %arg8: memref<64x16xf32, #tpu.memory_space<vmem>>, %arg9: memref<1x16xf32, #tpu.memory_space<vmem>>, %arg10: memref<8x16xf32, #tpu.memory_space<vmem>>, %arg11: memref<1x16xf32, #tpu.memory_space<vmem>>) attributes {dimension_semantics = [#tpu.dimension_semantics<parallel>, #tpu.dimension_semantics<arbitrary>], iteration_bounds = array<i64: 1, 1>, scalar_prefetch = 0 : i64, scratch_operands = 1 : i64, tpu.core_type = #tpu.core_type<tc>, window_params = [{transform_indices = @transform_0, window_bounds = array<i64: 8, 32>}, {transform_indices = @transform_1, window_bounds = array<i64: 8, 16>}, {pipeline_mode = #tpu.pipeline_mode<synchronous>, transform_indices = @transform_2, window_bounds = array<i64: 1, 32>}, {pipeline_mode = #tpu.pipeline_mode<synchronous>, transform_indices = @transform_3, window_bounds = array<i64: 1, 32>}, {pipeline_mode = #tpu.pipeline_mode<synchronous>, transform_indices = @transform_4, window_bounds = array<i64: 32, 64>}, {pipeline_mode = #tpu.pipeline_mode<synchronous>, transform_indices = @transform_5, window_bounds = array<i64: 1, 64>}, {pipeline_mode = #tpu.pipeline_mode<synchronous>, transform_indices = @transform_6, window_bounds = array<i64: 64, 16>}, {pipeline_mode = #tpu.pipeline_mode<synchronous>, transform_indices = @transform_7, window_bounds = array<i64: 1, 16>}, {transform_indices = @transform_8, window_bounds = array<i64: 8, 16>}]} {
    %c0_i32 = arith.constant 0 : i32
    %0 = arith.cmpi eq, %arg1, %c0_i32 : i32
    %1 = arith.extui %0 : i1 to i32
    %c0_i32_0 = arith.constant 0 : i32
    %2 = arith.cmpi ne, %1, %c0_i32_0 : i32
    scf.if %2 {
      %cst_37 = arith.constant 0.000000e+00 : f32
      %69 = vector.broadcast %cst_37 : f32 to vector<1x16xf32>
      %c0_38 = arith.constant 0 : index
      %c0_39 = arith.constant 0 : index
      %70 = vector.load %arg11[%c0_38, %c0_39] : memref<1x16xf32, #tpu.memory_space<vmem>>, vector<1x16xf32>
      tpu.vector_store %arg11[%c0_38, %c0_39], %69 {strides = array<i32>} : memref<1x16xf32, #tpu.memory_space<vmem>>, vector<1x16xf32>,
    } else {
    }
    %c0 = arith.constant 0 : index
    %c0_1 = arith.constant 0 : index
    %3 = vector.load %arg2[%c0, %c0_1] : memref<8x32xf32, #tpu.memory_space<vmem>>, vector<8x32xf32>
    %cst = arith.constant dense<0.000000e+00> : vector<8xf32>
    %4 = vector.multi_reduction <add>, %3, %cst [1] : vector<8x32xf32> to vector<8xf32>
    %5 = vector.shape_cast %4 : vector<8xf32> to vector<8x1xf32>
    %cst_2 = arith.constant 3.200000e+01 : f32
    %6 = vector.broadcast %cst_2 : f32 to vector<8x1xf32>
    %7 = arith.divf %5, %6 : vector<8x1xf32>
    %8 = vector.broadcast %7 : vector<8x1xf32> to vector<8x32xf32>
    %9 = arith.subf %3, %8 : vector<8x32xf32>
    %10 = arith.mulf %9, %9 : vector<8x32xf32>
    %cst_3 = arith.constant dense<0.000000e+00> : vector<8xf32>
    %11 = vector.multi_reduction <add>, %10, %cst_3 [1] : vector<8x32xf32> to vector<8xf32>
    %12 = vector.shape_cast %11 : vector<8xf32> to vector<8x1xf32>
    %cst_4 = arith.constant 3.200000e+01 : f32
    %13 = vector.broadcast %cst_4 : f32 to vector<8x1xf32>
    %14 = arith.divf %12, %13 : vector<8x1xf32>
    %cst_5 = arith.constant 9.99999974E-6 : f32
    %15 = vector.broadcast %cst_5 : f32 to vector<8x1xf32>
    %16 = arith.addf %14, %15 : vector<8x1xf32>
    %17 = math.rsqrt %16 : vector<8x1xf32>
    %18 = vector.broadcast %17 : vector<8x1xf32> to vector<8x32xf32>
    %19 = arith.mulf %9, %18 : vector<8x32xf32>
    %c0_6 = arith.constant 0 : index
    %c0_7 = arith.constant 0 : index
    %20 = vector.load %arg4[%c0_6, %c0_7] : memref<1x32xf32, #tpu.memory_space<vmem>>, vector<1x32xf32>
    %21 = vector.broadcast %20 : vector<1x32xf32> to vector<8x32xf32>
    %22 = arith.mulf %19, %21 : vector<8x32xf32>
    %c0_8 = arith.constant 0 : index
    %c0_9 = arith.constant 0 : index
    %23 = vector.load %arg5[%c0_8, %c0_9] : memref<1x32xf32, #tpu.memory_space<vmem>>, vector<1x32xf32>
    %24 = vector.broadcast %23 : vector<1x32xf32> to vector<8x32xf32>
    %25 = arith.addf %22, %24 : vector<8x32xf32>
    %c0_10 = arith.constant 0 : index
    %c0_11 = arith.constant 0 : index
    %26 = vector.load %arg6[%c0_10, %c0_11] : memref<32x64xf32, #tpu.memory_space<vmem>>, vector<32x64xf32>
    %cst_12 = arith.constant dense<0.000000e+00> : vector<8x64xf32>
    %27 = tpu.matmul %25, %26, %cst_12 {dimension_numbers = #tpu.dot_dimension_numbers<[1], [0], [0], [1], [0, 0, 1, 1], [], []>} : vector<8x32xf32>, vector<32x64xf32>, vector<8x64xf32> -> vector<8x64xf32>
    %c0_13 = arith.constant 0 : index
    %c0_14 = arith.constant 0 : index
    %28 = vector.load %arg7[%c0_13, %c0_14] : memref<1x64xf32, #tpu.memory_space<vmem>>, vector<1x64xf32>
    %29 = vector.broadcast %28 : vector<1x64xf32> to vector<8x64xf32>
    %30 = arith.addf %27, %29 : vector<8x64xf32>
    %cst_15 = arith.constant 0.000000e+00 : f32
    %31 = vector.broadcast %cst_15 : f32 to vector<8x64xf32>
    %32 = arith.maximumf %30, %31 : vector<8x64xf32>
    %c0_16 = arith.constant 0 : index
    %c0_17 = arith.constant 0 : index
    %33 = vector.load %arg8[%c0_16, %c0_17] : memref<64x16xf32, #tpu.memory_space<vmem>>, vector<64x16xf32>
    %cst_18 = arith.constant dense<0.000000e+00> : vector<8x16xf32>
    %34 = tpu.matmul %32, %33, %cst_18 {dimension_numbers = #tpu.dot_dimension_numbers<[1], [0], [0], [1], [0, 0, 1, 1], [], []>} : vector<8x64xf32>, vector<64x16xf32>, vector<8x16xf32> -> vector<8x16xf32>
    %c0_19 = arith.constant 0 : index
    %c0_20 = arith.constant 0 : index
    %35 = vector.load %arg9[%c0_19, %c0_20] : memref<1x16xf32, #tpu.memory_space<vmem>>, vector<1x16xf32>
    %36 = vector.broadcast %35 : vector<1x16xf32> to vector<8x16xf32>
    %37 = arith.addf %34, %36 : vector<8x16xf32>
    %c0_21 = arith.constant 0 : index
    %c0_22 = arith.constant 0 : index
    %38 = vector.load %arg3[%c0_21, %c0_22] : memref<8x16xf32, #tpu.memory_space<vmem>>, vector<8x16xf32>
    %cst_23 = arith.constant 0.000000e+00 : f32
    %39 = vector.broadcast %cst_23 : f32 to vector<8x16xf32>
    %40 = arith.maximumf %37, %39 : vector<8x16xf32>
    %41 = math.absf %37 : vector<8x16xf32>
    %cst_24 = arith.constant 0.000000e+00 : f32
    %42 = vector.broadcast %cst_24 : f32 to vector<8x16xf32>
    %43 = arith.subf %42, %41 : vector<8x16xf32>
    %44 = math.exp %43 : vector<8x16xf32>
    %45 = math.log1p %44 : vector<8x16xf32>
    %46 = arith.addf %40, %45 : vector<8x16xf32>
    %47 = arith.subf %37, %46 : vector<8x16xf32>
    %cst_25 = arith.constant -1.000000e+02 : f32
    %48 = vector.broadcast %cst_25 : f32 to vector<8x16xf32>
    %49 = arith.maximumf %47, %48 : vector<8x16xf32>
    %cst_26 = arith.constant 0.000000e+00 : f32
    %50 = vector.broadcast %cst_26 : f32 to vector<8x16xf32>
    %51 = arith.subf %50, %46 : vector<8x16xf32>
    %cst_27 = arith.constant -1.000000e+02 : f32
    %52 = vector.broadcast %cst_27 : f32 to vector<8x16xf32>
    %53 = arith.maximumf %51, %52 : vector<8x16xf32>
    %54 = arith.mulf %38, %49 : vector<8x16xf32>
    %cst_28 = arith.constant 1.000000e+00 : f32
    %55 = vector.broadcast %cst_28 : f32 to vector<8x16xf32>
    %56 = arith.subf %55, %38 : vector<8x16xf32>
    %57 = arith.mulf %56, %53 : vector<8x16xf32>
    %58 = arith.addf %54, %57 : vector<8x16xf32>
    %cst_29 = arith.constant 0.000000e+00 : f32
    %59 = vector.broadcast %cst_29 : f32 to vector<8x16xf32>
    %60 = arith.subf %59, %58 : vector<8x16xf32>
    %c0_30 = arith.constant 0 : index
    %c0_31 = arith.constant 0 : index
    %61 = vector.load %arg11[%c0_30, %c0_31] : memref<1x16xf32, #tpu.memory_space<vmem>>, vector<1x16xf32>
    %cst_32 = arith.constant dense<0.000000e+00> : vector<16xf32>
    %62 = vector.multi_reduction <add>, %60, %cst_32 [0] : vector<8x16xf32> to vector<16xf32>
    %63 = vector.shape_cast %62 : vector<16xf32> to vector<1x16xf32>
    %64 = arith.addf %61, %63 : vector<1x16xf32>
    %c0_33 = arith.constant 0 : index
    %c0_34 = arith.constant 0 : index
    %65 = vector.load %arg11[%c0_33, %c0_34] : memref<1x16xf32, #tpu.memory_space<vmem>>, vector<1x16xf32>
    tpu.vector_store %arg11[%c0_33, %c0_34], %64 {strides = array<i32>} : memref<1x16xf32, #tpu.memory_space<vmem>>, vector<1x16xf32>,
    %c0_i32_35 = arith.constant 0 : i32
    %66 = arith.cmpi eq, %arg1, %c0_i32_35 : i32
    %67 = arith.extui %66 : i1 to i32
    %c0_i32_36 = arith.constant 0 : i32
    %68 = arith.cmpi ne, %67, %c0_i32_36 : i32
    scf.if %68 {
      %69 = tpu.iota {dimensions = array<i32: 0>} : vector<8x16xi32>
      %c0_i32_37 = arith.constant 0 : i32
      %70 = vector.broadcast %c0_i32_37 : i32 to vector<8x16xi32>
      %71 = arith.cmpi eq, %69, %70 : vector<8x16xi32>
      %c0_38 = arith.constant 0 : index
      %c0_39 = arith.constant 0 : index
      %72 = vector.load %arg11[%c0_38, %c0_39] : memref<1x16xf32, #tpu.memory_space<vmem>>, vector<1x16xf32>
      %cst_40 = arith.constant 0.000000e+00 : f32
      %73 = vector.shape_cast %72 : vector<1x16xf32> to vector<1x16xf32>
      %74 = vector.broadcast %73 : vector<1x16xf32> to vector<8x16xf32>
      %75 = vector.broadcast %cst_40 : f32 to vector<8x16xf32>
      %76 = arith.select %71, %74, %75 : vector<8x16xi1>, vector<8x16xf32>
      %c0_41 = arith.constant 0 : index
      %c0_42 = arith.constant 0 : index
      %77 = vector.load %arg10[%c0_41, %c0_42] : memref<8x16xf32, #tpu.memory_space<vmem>>, vector<8x16xf32>
      tpu.vector_store %arg10[%c0_41, %c0_42], %76 {strides = array<i32>} : memref<8x16xf32, #tpu.memory_space<vmem>>, vector<8x16xf32>,
    } else {
    }
    return
  }
  func.func @transform_0(%arg0: i32, %arg1: i32) -> (i32, i32) {
    %c1_i32 = arith.constant 1 : i32
    %0 = arith.muli %arg0, %c1_i32 : i32
    %1 = arith.addi %0, %arg1 : i32
    %c0_i32 = arith.constant 0 : i32
    %c0_i32_0 = arith.constant 0 : i32
    return %1, %c0_i32 : i32, i32
  }
  func.func @transform_1(%arg0: i32, %arg1: i32) -> (i32, i32) {
    %c1_i32 = arith.constant 1 : i32
    %0 = arith.muli %arg0, %c1_i32 : i32
    %1 = arith.addi %0, %arg1 : i32
    %c0_i32 = arith.constant 0 : i32
    %c0_i32_0 = arith.constant 0 : i32
    return %1, %c0_i32 : i32, i32
  }
  func.func @transform_2(%arg0: i32, %arg1: i32) -> (i32, i32) {
    %c0_i32 = arith.constant 0 : i32
    %c0_i32_0 = arith.constant 0 : i32
    %c0_i32_1 = arith.constant 0 : i32
    return %c0_i32, %c0_i32_0 : i32, i32
  }
  func.func @transform_3(%arg0: i32, %arg1: i32) -> (i32, i32) {
    %c0_i32 = arith.constant 0 : i32
    %c0_i32_0 = arith.constant 0 : i32
    %c0_i32_1 = arith.constant 0 : i32
    return %c0_i32, %c0_i32_0 : i32, i32
  }
  func.func @transform_4(%arg0: i32, %arg1: i32) -> (i32, i32) {
    %c0_i32 = arith.constant 0 : i32
    %c0_i32_0 = arith.constant 0 : i32
    %c0_i32_1 = arith.constant 0 : i32
    return %c0_i32, %c0_i32_0 : i32, i32
  }
  func.func @transform_5(%arg0: i32, %arg1: i32) -> (i32, i32) {
    %c0_i32 = arith.constant 0 : i32
    %c0_i32_0 = arith.constant 0 : i32
    %c0_i32_1 = arith.constant 0 : i32
    return %c0_i32, %c0_i32_0 : i32, i32
  }
  func.func @transform_6(%arg0: i32, %arg1: i32) -> (i32, i32) {
    %c0_i32 = arith.constant 0 : i32
    %c0_i32_0 = arith.constant 0 : i32
    %c0_i32_1 = arith.constant 0 : i32
    return %c0_i32, %c0_i32_0 : i32, i32
  }
  func.func @transform_7(%arg0: i32, %arg1: i32) -> (i32, i32) {
    %c0_i32 = arith.constant 0 : i32
    %c0_i32_0 = arith.constant 0 : i32
    %c0_i32_1 = arith.constant 0 : i32
    return %c0_i32, %c0_i32_0 : i32, i32
  }
  func.func @transform_8(%arg0: i32, %arg1: i32) -> (i32, i32) {
    %c0_i32 = arith.constant 0 : i32
    %c0_i32_0 = arith.constant 0 : i32
    return %arg0, %c0_i32 : i32, i32
  }
}

</mosaic_0001>

<llo_original>
// kernel: tpu_custom_call.1
$region0: #{tpu_custom_call.1}
  #allocation0 [shape = 'u32[]', space=smem, size = 0x4, offset = 0x4, fixed_abs, tag = 'smem constant byte address 0x4 - core index']
  #allocation1 [shape = 'u32[72,128]{1,0:T(1,128)}', space=vmem, size = 0x9000, scoped, tag = 'internal scratch']
  #allocation2 [shape = 'f32[1,16]{1,0:T(1,128)}', space=vmem, size = 0x200, scoped, tag = 'scratch operand']
  %s0 = inlined_call_operand.vmem [shape: f32[8,32], index: 0, kind: input, shape index: {}]
  %s1 = inlined_call_operand.vmem [shape: f32[8,16], index: 1, kind: input, shape index: {}]
  %s2 = inlined_call_operand.vmem [shape: f32[1,32], index: 2, kind: input, shape index: {}]
  %s3 = inlined_call_operand.vmem [shape: f32[1,32], index: 3, kind: input, shape index: {}]
  %s4 = inlined_call_operand.vmem [shape: f32[32,64], index: 4, kind: input, shape index: {}]
  %s5 = inlined_call_operand.vmem [shape: f32[1,64], index: 5, kind: input, shape index: {}]
  %s6 = inlined_call_operand.vmem [shape: f32[64,16], index: 6, kind: input, shape index: {}]
  %s7 = inlined_call_operand.vmem [shape: f32[1,16], index: 7, kind: input, shape index: {}]
  %s8 = inlined_call_operand.hbm [shape: f32[8,16], index: 8, kind: output, shape index: {}]
  %s9 = sld [smem:[#allocation0]]
  $region50: #{tpu_custom_call.1} parent=0
    _
  %s11 = ssub.s32 1, %s9
  %s12 = scalar_select 0, %s11, %s9
  $region1: #{tpu_custom_call.1} parent=0
    #allocation3 [shape = 'u8[4096]{0}', space=vmem, size = 0x1000, scoped, tag = 'output window, operand 0, single buffered']
    #allocation4 [shape = 's32[1]{0}', space=sflag, size = 0x4, scoped, tag = 'scoped memory for tpu_custom_call.1']
    %13 = vsyncpa [#allocation4], 0
    // Predicated region
    $region2: #{tpu_custom_call.1} parent=1 // pred_check
      _
    $region3: #{tpu_custom_call.1} parent=1 // pred_check_branch
      %15 = sbr.rel (0) target = $region5
    $region4: #{tpu_custom_call.1} parent=1 // pred_region
      %s16 = sadd.s32 0, 0
      %p17 = scmp.lt.s32.totalorder %s16, 0
      %s18 = scalar_select %p17, %s16, 0
      %s19 = smul.addr %s18, 8
      %s20 = scalar_lea.vmem %s0, %s19
      %s21 = sadd.s32 0, 0
    $region5: #{tpu_custom_call.1} parent=1 // pred_fallthru
      _
    // Predicated region
    $region6: #{tpu_custom_call.1} parent=1 // pred_check
      _
    $region7: #{tpu_custom_call.1} parent=1 // pred_check_branch
      %23 = sbr.rel (0) target = $region9
    $region8: #{tpu_custom_call.1} parent=1 // pred_region
      %s24 = sadd.s32 0, 0
      %p25 = scmp.lt.s32.totalorder %s24, 0
      %s26 = scalar_select %p25, %s24, 0
      %s27 = smul.addr %s26, 8
      %s28 = scalar_lea.vmem %s1, %s27
      %s29 = sadd.s32 0, 0
    $region9: #{tpu_custom_call.1} parent=1 // pred_fallthru
      _
    // Predicated region
    $region10: #{tpu_custom_call.1} parent=1 // pred_check
      _
    $region11: #{tpu_custom_call.1} parent=1 // pred_check_branch
      %31 = sbr.rel (0) target = $region13
    $region12: #{tpu_custom_call.1} parent=1 // pred_region
      _
    $region13: #{tpu_custom_call.1} parent=1 // pred_fallthru
      _
    // Predicated region
    $region14: #{tpu_custom_call.1} parent=1 // pred_check
      _
    $region15: #{tpu_custom_call.1} parent=1 // pred_check_branch
      %33 = sbr.rel (0) target = $region17
    $region16: #{tpu_custom_call.1} parent=1 // pred_region
      _
    $region17: #{tpu_custom_call.1} parent=1 // pred_fallthru
      _
    // Predicated region
    $region18: #{tpu_custom_call.1} parent=1 // pred_check
      _
    $region19: #{tpu_custom_call.1} parent=1 // pred_check_branch
      %35 = sbr.rel (0) target = $region21
    $region20: #{tpu_custom_call.1} parent=1 // pred_region
      _
    $region21: #{tpu_custom_call.1} parent=1 // pred_fallthru
      _
    // Predicated region
    $region22: #{tpu_custom_call.1} parent=1 // pred_check
      _
    $region23: #{tpu_custom_call.1} parent=1 // pred_check_branch
      %37 = sbr.rel (0) target = $region25
    $region24: #{tpu_custom_call.1} parent=1 // pred_region
      _
    $region25: #{tpu_custom_call.1} parent=1 // pred_fallthru
      _
    // Predicated region
    $region26: #{tpu_custom_call.1} parent=1 // pred_check
      _
    $region27: #{tpu_custom_call.1} parent=1 // pred_check_branch
      %39 = sbr.rel (0) target = $region29
    $region28: #{tpu_custom_call.1} parent=1 // pred_region
      _
    $region29: #{tpu_custom_call.1} parent=1 // pred_fallthru
      _
    // Predicated region
    $region30: #{tpu_custom_call.1} parent=1 // pred_check
      _
    $region31: #{tpu_custom_call.1} parent=1 // pred_check_branch
      %41 = sbr.rel (0) target = $region33
    $region32: #{tpu_custom_call.1} parent=1 // pred_region
      _
    $region33: #{tpu_custom_call.1} parent=1 // pred_fallthru
      _
    %s42 = sadd.s32 0, 0
    %p43 = scmp.lt.s32.totalorder %s42, 0
    %s44 = scalar_select %p43, %s42, 0
    %s45 = smul.addr %s44, 8
    %s46 = scalar_lea.vmem %s0, %s45
    %s47 = sadd.s32 0, 0
    %p48 = scmp.lt.s32.totalorder %s47, 0
    %s49 = scalar_select %p48, %s47, 0
    %s50 = smul.addr %s49, 8
    %s51 = scalar_lea.vmem %s1, %s50
    %s52 = sadd.s32 0, 0
    %p53 = scmp.lt.s32.totalorder %s52, 0
    %s54 = scalar_select %p53, %s52, 0
    %s55 = smul.addr %s54, 8
    %s56 = scalar_lea.vmem %s0, %s55
    %s57 = sadd.s32 0, 0
    %s58 = sadd.s32 0, 0
    %p59 = scmp.lt.s32.totalorder %s58, 0
    %s60 = scalar_select %p59, %s58, 0
    %s61 = smul.addr %s60, 8
    %s62 = scalar_lea.vmem %s1, %s61
    %s63 = sadd.s32 0, 0
    %p64 = scmp.eq.s32.totalorder 0, 0
    // Predicated region
    $region34: #{tpu_custom_call.1} parent=1 // pred_check
      %p65 = pneg %p64
    $region35: #{tpu_custom_call.1} parent=1 // pred_check_branch
      %67 = sbr.rel (%p65) target = $region37
    $region36: #{tpu_custom_call.1} parent=1 // pred_region
      %vm68 = vcmask 122880
      %69 = vst.msk [vmem:[#allocation2] sm:$0x1] %vm68, 0.0
    $region37: #{tpu_custom_call.1} parent=1 // pred_fallthru
      _
    %v70 = vld [vmem:[%s56] sm:$0xff]
    %vm71 = vcmask 261120
    %v72 = vsel %vm71, %v70, 0.0
    %73 = vadd.xlane.f32.xlu0 %v72
    %v74 = vpop.xlane.xlu0 %73
    %v75 = vrcp.pop 32.0
    %v76 = vmul.f32 32.0, %v75
    %v77 = vsub.f32 1.0, %v76
    %v78 = vmul.f32 %v75, %v77
    %v79 = vadd.f32 %v75, %v78
    %vm80 = vweird.f32 %v75
    %v81 = vsel %vm80, %v75, %v79
    %v82 = vmul.f32 %v74, %v81
    %v83 = vsub.f32 %v70, %v82
    %v84 = vmul.f32 %v83, %v83
    %v85 = vsel %vm71, %v84, 0.0
    %86 = vadd.xlane.f32.xlu0 %v85
    %v87 = vpop.xlane.xlu0 %86
    %v88 = vmul.f32 %v87, %v81
    %v89 = vadd.f32 %v88, 1e-05
    %v90 = vrsqrt.pop %v89
    %v91 = vmul.f32 %v90, %v89
    %v92 = vmul.f32 %v91, %v90
    %v93 = vmul.f32 0.5, %v92
    %v94 = vsub.f32 1.5, %v93
    %v95 = vmul.f32 %v90, %v94
    %vm96 = vweird.f32 %v89
    %vm97 = vweird.f32 %v90
    %vm98 = vmor %vm96, %vm97
    %v99 = vsel %vm98, %v90, %v95
    %v100 = vmul.f32 %v83, %v99
    %v101 = vld [vmem:[%s2] sm:$0x1]
    %v103 = vperm.slane %v101, 0
    %v105 = vmul.f32 %v100, %v103
    %v106 = vld [vmem:[%s3] sm:$0x1]
    %v108 = vperm.slane %v106, 0
    %v110 = vadd.f32 %v105, %v108
    %v111 = vld [vmem:[%s4] sm:$0xff]
    %v112 = vld [vmem:[%s4 + $0x8] sm:$0xff]
    %v113 = vld [vmem:[%s4 + $0x10] sm:$0xff]
    %v114 = vld [vmem:[%s4 + $0x18] sm:$0xff]
    %v115 = vld [vmem:[%s5] sm:$0x1]
    %v117 = vperm.slane %v115, 0
    %v120 = vsel %vm71, %v110, 0
    %122 = vmatpush.msra.mxu0 0.0
    %123 = vmatpush.msra.mxu0 0.0
    %124 = vmatpush.msra.mxu0 0.0
    %125 = vmatpush.msra.mxu0 0.0
    %126 = vmatpush.msra.mxu0 0.0
    %127 = vmatpush.msra.mxu0 0.0
    %128 = vmatpush.msra.mxu0 0.0
    %129 = vmatpush.msra.mxu0 0.0
    %130 = vmatpush.msra.mxu0 0.0
    %131 = vmatpush.msra.mxu0 0.0
    %132 = vmatpush.msra.mxu0 0.0
    %133 = vmatpush.msra.mxu0 0.0
    %134 = vmatpush.msra.mxu0 %v114
    %135 = vmatpush.msra.mxu0 %v113
    %136 = vmatpush.msra.mxu0 %v112
    %137 = vmatpush.msra.mxu0 %v111
    %138 = vmatmul.f32.gmra.mxu0 %v120
    %v139 = vpop.f32.mrf.mxu0
    %v140 = vadd.f32 %v117, %v139
    %141 = vdwg.mxu0
    %v142 = vmax.f32 %v140, 0.0
    %v143 = vld [vmem:[%s6] sm:$0xff]
    %v144 = vld [vmem:[%s6 + $0x8] sm:$0xff]
    %v145 = vld [vmem:[%s6 + $0x10] sm:$0xff]
    %v146 = vld [vmem:[%s6 + $0x18] sm:$0xff]
    %v147 = vld [vmem:[%s6 + $0x20] sm:$0xff]
    %v148 = vld [vmem:[%s6 + $0x28] sm:$0xff]
    %v149 = vld [vmem:[%s6 + $0x30] sm:$0xff]
    %v150 = vld [vmem:[%s6 + $0x38] sm:$0xff]
    %v151 = vld [vmem:[%s7] sm:$0x1]
    %v153 = vperm.slane %v151, 0
    %vm155 = vcmask 523264
    %v157 = vsel %vm155, %v142, 0
    %159 = vmatpush.msra.mxu0 0.0
    %160 = vmatpush.msra.mxu0 0.0
    %161 = vmatpush.msra.mxu0 0.0
    %162 = vmatpush.msra.mxu0 0.0
    %163 = vmatpush.msra.mxu0 0.0
    %164 = vmatpush.msra.mxu0 0.0
    %165 = vmatpush.msra.mxu0 0.0
    %166 = vmatpush.msra.mxu0 0.0
    %167 = vmatpush.msra.mxu0 %v150
    %168 = vmatpush.msra.mxu0 %v149
    %169 = vmatpush.msra.mxu0 %v148
    %170 = vmatpush.msra.mxu0 %v147
    %171 = vmatpush.msra.mxu0 %v146
    %172 = vmatpush.msra.mxu0 %v145
    %173 = vmatpush.msra.mxu0 %v144
    %174 = vmatpush.msra.mxu0 %v143
    %175 = vmatmul.f32.gmra.mxu0 %v157
    %v176 = vpop.f32.mrf.mxu0
    %v177 = vadd.f32 %v153, %v176
    %178 = vdwg.mxu0
    %v179 = vld [vmem:[%s62] sm:$0xff]
    %v180 = vmax.f32 %v177, 0.0
    %v181 = vand.u32 2147483647, %v177
    %v182 = vsub.f32 0.0, %v181
    %v183 = vmul.f32 %v182, 1.442695
    %v184 = vpow.pop %v183
    %v185 = vadd.f32 %v184, 1.0
    %v186 = vlog2.pop %v185
    %v187 = vmul.f32 %v186, 0.6931472
    %v188 = vmul.f32 -0.5, %v184
    %v189 = vadd.f32 %v188, 1.0
    %v190 = vmul.f32 %v189, %v184
    %v191 = vand.u32 2147483647, %v184
    %vm192 = vcmp.lt.f32.partialorder %v191, 0.0004427343
    %v193 = vsel %vm192, %v190, %v187
    %v194 = vadd.f32 %v180, %v193
    %v195 = vsub.f32 %v177, %v194
    %v196 = vmax.f32 %v195, -100.0
    %v197 = vsub.f32 0.0, %v194
    %v198 = vmax.f32 %v197, -100.0
    %v199 = vmul.f32 %v179, %v196
    %v200 = vsub.f32 1.0, %v179
    %v201 = vmul.f32 %v200, %v198
    %v202 = vadd.f32 %v199, %v201
    %v203 = vsub.f32 0.0, %v202
    %v204 = vld [vmem:[#allocation2] sm:$0x1]
    %vm205 = vcmask 130048
    %v206 = vsel %vm205, %v203, 0.0
    %v207 = vrot.slane %v206, 4
    %v208 = vadd.f32 %v206, %v207
    %v209 = vrot.slane %v208, 2
    %v210 = vadd.f32 %v208, %v209
    %v211 = vrot.slane %v210, 1
    %v212 = vadd.f32 %v210, %v211
    %v213 = vadd.f32 %v204, %v212
    %vm214 = vcmask 122880
    %215 = vst.msk [vmem:[#allocation2] sm:$0x1] %vm214, %v213
    // Predicated region
    $region38: #{tpu_custom_call.1} parent=1 // pred_check
      %p216 = pneg %p64
    $region39: #{tpu_custom_call.1} parent=1 // pred_check_branch
      %218 = sbr.rel (%p216) target = $region41
    $region40: #{tpu_custom_call.1} parent=1 // pred_region
      %v219 = vlaneseq
      %v220 = vshrl.u32 %v219, 7
      %vm221 = vcmp.eq.s32.totalorder %v220, 0
      %v222 = vld [vmem:[#allocation2] sm:$0x1]
      %v224 = vperm.slane %v222, 0
      %v226 = vsel %vm221, %v224, 0.0
      %227 = vst.msk [vmem:[#allocation3] sm:$0xff] %vm205, %v226
    $region41: #{tpu_custom_call.1} parent=1 // pred_fallthru
      _
    // Predicated region
    $region42: #{tpu_custom_call.1} parent=1 // pred_check
      _
    $region43: #{tpu_custom_call.1} parent=1 // pred_check_branch
      %229 = sbr.rel (0) target = $region45
    $region44: #{tpu_custom_call.1} parent=1 // pred_region
      %231 = vsyncadd [#allocation4], 0
      %s233 = sshll.u32 [#allocation3], 4
      %s234 = int_to_ptr.vmem [resolvable:$true] %s233
      %s235 = sshll.u32 %s8, 4
      %s236 = int_to_ptr.hbm [resolvable:$true] %s235
      %238 = dma.vmem_to_hbm [thread:$0]  %s234, 128, %s236, [#allocation4]
    $region45: #{tpu_custom_call.1} parent=1 // pred_fallthru
      _
    // Predicated region
    $region46: #{tpu_custom_call.1} parent=1 // pred_check
      _
    $region47: #{tpu_custom_call.1} parent=1 // pred_check_branch
      %240 = sbr.rel (0) target = $region49
    $region48: #{tpu_custom_call.1} parent=1 // pred_region
      %242 = dma.done [#allocation4], 128
    $region49: #{tpu_custom_call.1} parent=1 // pred_fallthru
      _
    %243 = vsyncpa [#allocation4], 1

</llo_original>
